<compile_context>
chip_gen: v5e
topology: v5e:2x2
jax: 0.10.0
libtpu: 0.0.40
codegen_flags: <defaults>
</compile_context>

<pallas_src>
import jax
import jax.numpy as jnp
from jax.experimental import pallas as pl
from jax.experimental.pallas import tpu as pltpu


def gaussian_kernel(x_ref, y_ref, out_ref):
    # x_ref:   (TB, TN, F+2) VMEM -- pre-scaled augmented row tile
    # y_ref:   (TB, Nj, F+2) VMEM -- augmented node block, resident across rows
    # out_ref: (TB, TN, Nj)  VMEM -- adjacency tile
    acc = jnp.einsum('bif,bjf->bij', x_ref[...], y_ref[...],
                     preferred_element_type=jnp.float32)          # MXU
    # acc = scale * ||x_i - y_j||^2 <= 0 up to rounding; clamp so the diagonal
    # stays exp(0) = 1 like the direct-difference reference.
    out_ref[...] = jnp.exp(jnp.minimum(acc, 0.0)).astype(out_ref.dtype)  # EUP


def _round_tile(t, n):
    """Round a row-tile candidate down to MXU/store-friendly granularity."""
    t = max(1, min(t, n))
    if t == n:
        return t
    if t >= 128:
        return (t // 128) * 128
    if t >= 8:
        return (t // 8) * 8
    return min(8, n)


def _choose_tiles(B, N, N_pad, Fa, out_bytes, vmem_budget):
    in_bytes = 4
    # Double-buffered resident y block (TB = 1).
    y_bytes = 2 * N_pad * Fa * in_bytes
    # Budget for the double-buffered output tile (leave room for y + slack).
    out_budget = max(vmem_budget - y_bytes - (4 << 20), vmem_budget // 4)

    # --- row tile TN ---
    tn_cap = max(8, out_budget // max(2 * N_pad * out_bytes, 1))
    if N <= min(tn_cap, 1024):
        TN = N                                 # one row block covers the graph
    else:
        TN = _round_tile(min(tn_cap, 1024), N)
    # v7x megacore: when B == 1 keep >= 2 blocks on the (parallel) row axis.
    if B == 1 and N >= 16 and TN >= N:
        TN = _round_tile((N + 1) // 2, N - 1)

    # --- batch tile TB ---
    def footprint(tb, tn):
        return (2 * tb * tn * N_pad * out_bytes      # double-buffered out
                + 2 * tb * N_pad * Fa * in_bytes     # resident y block
                + 2 * tb * tn * Fa * in_bytes)       # row tile

    out_tile_cap = 6 << 20                           # per-buffer output tile
    row_blocks = pl.cdiv(N, TN)
    TB = 1
    for tb in range(2, B + 1):
        if B % tb != 0:
            continue
        if tb * TN * N_pad * out_bytes > out_tile_cap:
            break
        if footprint(tb, TN) > vmem_budget:
            break
        if (B // tb) * row_blocks < 2:               # keep >= 2 parallel blocks
            continue
        TB = tb
    return TB, TN


def gaussian_pallas(emb, sigma, *, spatial_coords=None, out_dtype=jnp.float32,
                    row_tile=None, batch_tile=None,
                    vmem_budget=44 * 1024 * 1024):
    """emb: (B, N, F); sigma: scalar or (1,). Returns adj (B, N, N)."""
    if spatial_coords is not None:
        emb = emb[:, :, spatial_coords]
    emb = emb.astype(jnp.float32)
    B, N, F = emb.shape
    Fa = F + 2

    sigma = jnp.asarray(sigma, jnp.float32).reshape(())
    scale = -1.0 / (jnp.float32(F) * sigma * sigma)          # < 0

    # Feature augmentation (wrapper side; O(B*N*F), negligible vs the output).
    sq = jnp.sum(emb * emb, axis=-1, keepdims=True)          # (B, N, 1)
    ones = jnp.ones_like(sq)
    x_aug = scale * jnp.concatenate([-2.0 * emb, sq, ones], axis=-1)  # (B,N,Fa)
    y_aug = jnp.concatenate([emb, ones, sq], axis=-1)                 # (B,N,Fa)

    # Lane-dense output: pad the last (lane) dim to a multiple of 128 when the
    # relative overhead is small; padded columns see zero y rows -> sliced off.
    out_bytes = jnp.dtype(out_dtype).itemsize
    N_pad = N
    if N % 128 != 0:
        cand = ((N + 127) // 128) * 128
        if N >= 512 and cand <= N * 1.125:
            N_pad = cand
            y_aug = jnp.pad(y_aug, ((0, 0), (0, N_pad - N), (0, 0)))

    TB, TN = _choose_tiles(B, N, N_pad, Fa, out_bytes, vmem_budget)
    if row_tile is not None:
        TN = row_tile
    if batch_tile is not None:
        TB = batch_tile

    footprint = (2 * TB * TN * N_pad * out_bytes         # double-buffered out
                 + 2 * TB * N_pad * Fa * 4                # resident y block
                 + 2 * TB * TN * Fa * 4)                  # row tile
    vmem_limit = int(max(16 << 20, min(100 << 20, footprint * 1.25 + (2 << 20))))

    grid = (pl.cdiv(B, TB), pl.cdiv(N, TN))
    adj = pl.pallas_call(
        gaussian_kernel,
        out_shape=jax.ShapeDtypeStruct((B, N, N_pad), out_dtype),
        grid=grid,
        in_specs=[
            pl.BlockSpec((TB, TN, Fa), lambda bi, ri: (bi, ri, 0)),    # rows
            pl.BlockSpec((TB, N_pad, Fa), lambda bi, ri: (bi, 0, 0)),  # all nodes
        ],
        out_specs=pl.BlockSpec((TB, TN, N_pad), lambda bi, ri: (bi, ri, 0)),
        compiler_params=pltpu.CompilerParams(
            dimension_semantics=("parallel", "parallel"),
            vmem_limit_bytes=vmem_limit),
    )(x_aug, y_aug)

    if N_pad != N:
        adj = adj[:, :, :N]
    return adj


def gaussian_reference(emb, sigma):
    """Pure-JAX mirror of the PyTorch forward (direct differences)."""
    diff = emb[:, :, None, :] - emb[:, None, :, :]
    sqdist = jnp.mean(diff * diff, axis=-1)
    return jnp.exp(-sqdist / (sigma ** 2))


if __name__ == "__main__":
    key = jax.random.PRNGKey(0)
    k_emb, k_sig, k_emb2 = jax.random.split(key, 3)

    # (batch, nb_node, fmap) as in Gaussian.forward
    B, N, F = 2, 16, 8
    emb = jax.random.normal(k_emb, (B, N, F), dtype=jnp.float32) * 0.5
    # sigma mimics Parameter(torch.rand(1) * 0.02 + 0.99)
    sigma = jax.random.uniform(k_sig, (1,), dtype=jnp.float32) * 0.02 + 0.99

    adj = jax.block_until_ready(gaussian_pallas(emb, sigma))
    ref = gaussian_reference(emb, sigma[0])
    assert adj.shape == (B, N, N)
    # Tolerance covers MXU rounding in the augmented gram-trick formulation vs
    # the direct-difference reference.
    assert jnp.allclose(adj, ref, atol=2e-3, rtol=2e-3), "mismatch vs reference"

    # Second check: single-batch graph with N not divisible by the row tile
    # (exercises the masked tail row block and the >=2-parallel-blocks path).
    B2, N2, F2 = 1, 24, 8
    emb2 = jax.random.normal(k_emb2, (B2, N2, F2), dtype=jnp.float32) * 0.5
    adj2 = jax.block_until_ready(gaussian_pallas(emb2, sigma, row_tile=16))
    ref2 = gaussian_reference(emb2, sigma[0])
    assert adj2.shape == (B2, N2, N2)
    assert jnp.allclose(adj2, ref2, atol=2e-3, rtol=2e-3), "mismatch (masked tail)"

    print("KERNEL_OK")
</pallas_src>

<mosaic_0001>
module attributes {stable_mosaic.version = 11 : i64} {
  func.func @gaussian_kernel(%arg0: i32, %arg1: i32, %arg2: memref<1x16x10xf32, #tpu.memory_space<vmem>>, %arg3: memref<1x16x10xf32, #tpu.memory_space<vmem>>, %arg4: memref<1x16x16xf32, #tpu.memory_space<vmem>>) attributes {dimension_semantics = [#tpu.dimension_semantics<parallel>, #tpu.dimension_semantics<parallel>], iteration_bounds = array<i64: 2, 1>, scalar_prefetch = 0 : i64, scratch_operands = 0 : i64, tpu.core_type = #tpu.core_type<tc>, window_params = [{transform_indices = @transform_0, window_bounds = array<i64: 1, 16, 10>}, {transform_indices = @transform_1, window_bounds = array<i64: 1, 16, 10>}, {transform_indices = @transform_2, window_bounds = array<i64: 1, 16, 16>}]} {
    %c0 = arith.constant 0 : index
    %c0_0 = arith.constant 0 : index
    %c0_1 = arith.constant 0 : index
    %0 = vector.load %arg2[%c0, %c0_0, %c0_1] : memref<1x16x10xf32, #tpu.memory_space<vmem>>, vector<1x16x10xf32>
    %c0_2 = arith.constant 0 : index
    %c0_3 = arith.constant 0 : index
    %c0_4 = arith.constant 0 : index
    %1 = vector.load %arg3[%c0_2, %c0_3, %c0_4] : memref<1x16x10xf32, #tpu.memory_space<vmem>>, vector<1x16x10xf32>
    "tpu.trace_start"() <{level = 10 : i32, message = "bif,bjf->bij"}> : () -> ()
    %cst = arith.constant dense<0.000000e+00> : vector<1x16x16xf32>
    %2 = tpu.matmul %0, %1, %cst {dimension_numbers = #tpu.dot_dimension_numbers<[2], [2], [1], [1], [0, 0, 0, 1, 1, 1], [0], [0]>} : vector<1x16x10xf32>, vector<1x16x10xf32>, vector<1x16x16xf32> -> vector<1x16x16xf32>
    "tpu.trace_stop"() : () -> ()
    %cst_5 = arith.constant 0.000000e+00 : f32
    %3 = vector.broadcast %cst_5 : f32 to vector<1x16x16xf32>
    %4 = arith.minimumf %2, %3 : vector<1x16x16xf32>
    %5 = math.exp %4 : vector<1x16x16xf32>
    %c0_6 = arith.constant 0 : index
    %c0_7 = arith.constant 0 : index
    %c0_8 = arith.constant 0 : index
    %6 = vector.load %arg4[%c0_6, %c0_7, %c0_8] : memref<1x16x16xf32, #tpu.memory_space<vmem>>, vector<1x16x16xf32>
    tpu.vector_store %arg4[%c0_6, %c0_7, %c0_8], %5 {strides = array<i32>} : memref<1x16x16xf32, #tpu.memory_space<vmem>>, vector<1x16x16xf32>,
    return
  }
  func.func @transform_0(%arg0: i32, %arg1: i32) -> (i32, i32, i32) {
    %c0_i32 = arith.constant 0 : i32
    %c0_i32_0 = arith.constant 0 : i32
    return %arg0, %arg1, %c0_i32 : i32, i32, i32
  }
  func.func @transform_1(%arg0: i32, %arg1: i32) -> (i32, i32, i32) {
    %c0_i32 = arith.constant 0 : i32
    %c0_i32_0 = arith.constant 0 : i32
    %c0_i32_1 = arith.constant 0 : i32
    return %arg0, %c0_i32, %c0_i32_0 : i32, i32, i32
  }
  func.func @transform_2(%arg0: i32, %arg1: i32) -> (i32, i32, i32) {
    %c0_i32 = arith.constant 0 : i32
    %c0_i32_0 = arith.constant 0 : i32
    return %arg0, %arg1, %c0_i32 : i32, i32, i32
  }
}

</mosaic_0001>

<llo_original>
// kernel: tpu_custom_call.1
$region0: #{tpu_custom_call.1}
  #allocation0 [shape = 'u32[]', space=smem, size = 0x4, offset = 0x4, fixed_abs, tag = 'smem constant byte address 0x4 - core index']
  #allocation1 [shape = 'u32[72,128]{1,0:T(1,128)}', space=vmem, size = 0x9000, scoped, tag = 'internal scratch']
  %s0 = inlined_call_operand.vmem [shape: f32[2,16,10], index: 0, kind: input, shape index: {}]
  %s1 = inlined_call_operand.vmem [shape: f32[2,16,10], index: 1, kind: input, shape index: {}]
  %s2 = inlined_call_operand.hbm [shape: f32[2,16,16], index: 2, kind: output, shape index: {}]
  %s3 = sld [smem:[#allocation0]]
  $region41: #{tpu_custom_call.1} parent=0
    _
  %s5 = ssub.s32 1, %s3
  %s6 = scalar_select 0, %s5, %s3
  $region1: #{tpu_custom_call.1} parent=0
    #allocation2 [shape = 'u8[16384]{0}', space=vmem, size = 0x4000, scoped, tag = 'output window, operand 0']
    #allocation3 [shape = 's32[2]{0}', space=sflag, size = 0x8, scoped, tag = 'scoped memory for tpu_custom_call.1']
    %7 = vsyncpa [#allocation3], 0
    %s8 = scalar_lea.sflag [#allocation3], 1
    %9 = vsyncpa %s8, 0
    loop: start=0, step=1, limit=4
    $region2: #{tpu_custom_call.1} parent=1 // loop_pre_header
      _
    $region3: #{tpu_custom_call.1} parent=1 // loop_header
      %s11 = sphi 0, %s15
      %p12 = scmp.ge.s32.totalorder %s11, 4
      %s18 = sphi 0, %s30
      %s19 = sphi 0, %s26
      %s20 = sphi 0, %s18
      %s21 = sphi 0, %s19
      %s22 = sphi 0, %s20
      %s23 = sphi 0, %s21
      %s35 = sphi 0, %s37
      %s38 = sphi 0, %s35
      %s39 = sphi 0, %s38
      %s55 = sphi 0, %s39
      %s61 = sphi 0, %s63
      %s64 = sphi 0, %s61
      %s65 = sphi 0, %s64
      %s81 = sphi 0, %s65
      %s89 = sphi 0, %s91
      %s92 = sphi 0, %s89
      %s93 = sphi 0, %s92
      %s109 = sphi 0, %s93
    $region4: #{tpu_custom_call.1} parent=1 // loop_header_branch
      %14 = sbr.rel (%p12) target = $region8
    $region5: #{tpu_custom_call.1} parent=1 // loop_body
      %s16 = ssub.s32 %s11, 1
      %s17 = ssub.s32 %s11, 2
      %s24 = sadd.s32 1, %s19
      %p25 = scmp.ge.s32.totalorder %s24, 1
      %s26 = scalar_select %p25, 0, %s24
      %s27 = sadd.s32 1, %s18
      %s28 = scalar_select %p25, %s27, %s18
      %p29 = scmp.ge.s32.totalorder %s28, 2
      %s30 = scalar_select %p29, 0, %s28
      %s31 = ssub.s32 %s18, %s30
      %s32 = ssub.s32 %s19, %s26
      %s33 = sor.u32 %s31, %s32
      %p34 = scmp.eq.s32.totalorder %s33, 0
      %s36 = sadd.s32 %s35, 1
      %s37 = scalar_select %p34, %s35, %s36
      %p40 = pneg %p34
      %p41 = scmp.eq.s32.totalorder %s11, 1
      %p42 = por %p40, %p41
      %p43 = scmp.ne.s32.totalorder %s35, %s38
      %p44 = scmp.eq.s32.totalorder %s11, 0
      %p45 = por %p43, %p44
      %p46 = scmp.ne.s32.totalorder %s35, %s38
      %p47 = scmp.eq.s32.totalorder %s16, 1
      %p48 = por %p46, %p47
      %p49 = scmp.ne.s32.totalorder %s38, %s39
      %p50 = scmp.eq.s32.totalorder %s16, 0
      %p51 = por %p49, %p50
      %p52 = scmp.ne.s32.totalorder %s38, %s39
      %p53 = scmp.eq.s32.totalorder %s17, 1
      %p54 = por %p52, %p53
      %p56 = scmp.ne.s32.totalorder %s39, %s55
      %p57 = scmp.eq.s32.totalorder %s17, 0
      %p58 = por %p56, %p57
      %s59 = ssub.s32 %s18, %s30
      %p60 = scmp.eq.s32.totalorder %s59, 0
      %s62 = sadd.s32 %s61, 1
      %s63 = scalar_select %p60, %s61, %s62
      %p66 = pneg %p60
      %p67 = scmp.eq.s32.totalorder %s11, 1
      %p68 = por %p66, %p67
      %p69 = scmp.ne.s32.totalorder %s61, %s64
      %p70 = scmp.eq.s32.totalorder %s11, 0
      %p71 = por %p69, %p70
      %p72 = scmp.ne.s32.totalorder %s61, %s64
      %p73 = scmp.eq.s32.totalorder %s16, 1
      %p74 = por %p72, %p73
      %p75 = scmp.ne.s32.totalorder %s64, %s65
      %p76 = scmp.eq.s32.totalorder %s16, 0
      %p77 = por %p75, %p76
      %p78 = scmp.ne.s32.totalorder %s64, %s65
      %p79 = scmp.eq.s32.totalorder %s17, 1
      %p80 = por %p78, %p79
      %p82 = scmp.ne.s32.totalorder %s65, %s81
      %p83 = scmp.eq.s32.totalorder %s17, 0
      %p84 = por %p82, %p83
      %s85 = ssub.s32 %s18, %s30
      %s86 = ssub.s32 %s19, %s26
      %s87 = sor.u32 %s85, %s86
      %p88 = scmp.eq.s32.totalorder %s87, 0
      %s90 = sadd.s32 %s89, 1
      %s91 = scalar_select %p88, %s89, %s90
      %p94 = pneg %p88
      %p95 = scmp.eq.s32.totalorder %s11, 1
      %p96 = por %p94, %p95
      %p97 = scmp.ne.s32.totalorder %s89, %s92
      %p98 = scmp.eq.s32.totalorder %s11, 0
      %p99 = por %p97, %p98
      %p100 = scmp.ne.s32.totalorder %s89, %s92
      %p101 = scmp.eq.s32.totalorder %s16, 1
      %p102 = por %p100, %p101
      %p103 = scmp.ne.s32.totalorder %s92, %s93
      %p104 = scmp.eq.s32.totalorder %s16, 0
      %p105 = por %p103, %p104
      %p106 = scmp.ne.s32.totalorder %s92, %s93
      %p107 = scmp.eq.s32.totalorder %s17, 1
      %p108 = por %p106, %p107
      %p110 = scmp.ne.s32.totalorder %s93, %s109
      %p111 = scmp.eq.s32.totalorder %s17, 0
      %p112 = por %p110, %p111
      %p113 = scmp.le.s32.totalorder 1, %s11
      %p114 = scmp.lt.s32.totalorder %s11, 3
      %p115 = pnand %p113, %p114
      %p116 = pneg %p115
      // Predicated region
      $region9: #{tpu_custom_call.1} parent=5 // pred_check
        _
      $region10: #{tpu_custom_call.1} parent=5 // pred_check_branch
        %118 = sbr.rel (%p115) target = $region12
      $region11: #{tpu_custom_call.1} parent=5 // pred_region
        %s119 = ssub.s32 %s11, 1
      $region12: #{tpu_custom_call.1} parent=5 // pred_fallthru
        _
      %p120 = scmp.lt.s32.totalorder %s11, 2
      // Predicated region
      $region13: #{tpu_custom_call.1} parent=5 // pred_check
        %p121 = pneg %p120
      $region14: #{tpu_custom_call.1} parent=5 // pred_check_branch
        %123 = sbr.rel (%p121) target = $region16
      $region15: #{tpu_custom_call.1} parent=5 // pred_region
        // Predicated region
        $region17: #{tpu_custom_call.1} parent=15 // pred_check
          %p124 = pneg %p45
        $region18: #{tpu_custom_call.1} parent=15 // pred_check_branch
          %126 = sbr.rel (%p124) target = $region20
        $region19: #{tpu_custom_call.1} parent=15 // pred_region
          %s127 = smul.u32 2, %s19
          %p128 = scmp.lt.s32.totalorder %s18, 1
          %s129 = scalar_select %p128, %s18, 1
          %p130 = scmp.lt.s32.totalorder %s127, 1
          %s131 = scalar_select %p130, %s127, 1
          %s132 = smul.addr %s129, 2
          %s133 = sadd.s32 %s131, %s132
          %s134 = smul.addr %s133, 8
          %s135 = scalar_lea.vmem %s0, %s134
          %s136 = smul.u32 2, %s19
        $region20: #{tpu_custom_call.1} parent=15 // pred_fallthru
          _
        // Predicated region
        $region21: #{tpu_custom_call.1} parent=15 // pred_check
          %p137 = pneg %p71
        $region22: #{tpu_custom_call.1} parent=15 // pred_check_branch
          %139 = sbr.rel (%p137) target = $region24
        $region23: #{tpu_custom_call.1} parent=15 // pred_region
          %p140 = scmp.lt.s32.totalorder %s18, 1
          %s141 = scalar_select %p140, %s18, 1
          %s142 = smul.addr %s141, 2
          %s143 = smul.addr %s142, 8
          %s144 = scalar_lea.vmem %s1, %s143
        $region24: #{tpu_custom_call.1} parent=15 // pred_fallthru
          _
      $region16: #{tpu_custom_call.1} parent=5 // pred_fallthru
        _
      %p145 = scmp.le.s32.totalorder 1, %s11
      %p146 = scmp.lt.s32.totalorder %s11, 3
      %p147 = pnand %p145, %p146
      %p148 = pneg %p147
      // Predicated region
      $region25: #{tpu_custom_call.1} parent=5 // pred_check
        _
      $region26: #{tpu_custom_call.1} parent=5 // pred_check_branch
        %150 = sbr.rel (%p147) target = $region28
      $region27: #{tpu_custom_call.1} parent=5 // pred_region
        %s151 = ssub.s32 %s11, 1
        %s152 = smul.u32 2, %s21
        %p153 = scmp.lt.s32.totalorder %s20, 1
        %s154 = scalar_select %p153, %s20, 1
        %p155 = scmp.lt.s32.totalorder %s152, 1
        %s156 = scalar_select %p155, %s152, 1
        %s157 = smul.addr %s154, 2
        %s158 = sadd.s32 %s156, %s157
        %s159 = smul.addr %s158, 8
        %s160 = scalar_lea.vmem %s0, %s159
        %p161 = pneg %p51
        %p162 = pneg %p48
        %p163 = scmp.lt.s32.totalorder %s20, 1
        %s164 = scalar_select %p163, %s20, 1
        %s165 = smul.addr %s164, 2
        %s166 = smul.addr %s165, 8
        %s167 = scalar_lea.vmem %s1, %s166
        %p168 = pneg %p77
        %p169 = pneg %p74
        %p170 = pneg %p105
        %p171 = pneg %p102
        %s172 = sand.u32 %s92, 1
        %s173 = scalar_lea.sflag [#allocation3], %s172
        %s174 = sand.u32 %s92, 1
        %s175 = smul.addr %s174, 16
        %s176 = scalar_lea.vmem [#allocation2], %s175
        %s177 = smul.u32 2, %s21
        %p178 = scmp.lt.s32.totalorder %s20, 1
        %s179 = scalar_select %p178, %s20, 1
        %p180 = scmp.lt.s32.totalorder %s177, 1
        %s181 = scalar_select %p180, %s177, 1
        %s182 = smul.addr %s179, 2
        %s183 = sadd.s32 %s181, %s182
        %s184 = smul.addr %s183, 8
        %s185 = scalar_lea.vmem %s0, %s184
        %s186 = smul.u32 2, %s21
        %p187 = scmp.lt.s32.totalorder %s20, 1
        %s188 = scalar_select %p187, %s20, 1
        %s189 = smul.addr %s188, 2
        %s190 = smul.addr %s189, 8
        %s191 = scalar_lea.vmem %s1, %s190
        %s192 = smul.u32 2, %s21
        %v193 = vld [vmem:[%s185] sm:$0xff]
        %v194 = vld [vmem:[%s185 + $0x8] sm:$0xff]
        %v195 = vld [vmem:[%s191] sm:$0xff]
        %v196 = vld [vmem:[%s191 + $0x8] sm:$0xff]
        %vm197 = vcmask 80896
        %v199 = vsel %vm197, %v193, 0
        %v202 = vsel %vm197, %v194, 0
        %v205 = vsel %vm197, %v195, 0
        %v208 = vsel %vm197, %v196, 0
        %210 = vmatpush.xpose.msra.mxu0 0.0
        %211 = vmatpush.xpose.msra.mxu0 0.0
        %212 = vmatpush.xpose.msra.mxu0 0.0
        %213 = vmatpush.xpose.msra.mxu0 0.0
        %214 = vmatpush.xpose.msra.mxu0 0.0
        %215 = vmatpush.xpose.msra.mxu0 0.0
        %216 = vmatpush.xpose.msra.mxu0 0.0
        %217 = vmatpush.xpose.msra.mxu0 0.0
        %218 = vmatpush.xpose.msra.mxu0 0.0
        %219 = vmatpush.xpose.msra.mxu0 0.0
        %220 = vmatpush.xpose.msra.mxu0 0.0
        %221 = vmatpush.xpose.msra.mxu0 0.0
        %222 = vmatpush.xpose.msra.mxu0 0.0
        %223 = vmatpush.xpose.msra.mxu0 0.0
        %224 = vmatpush.xpose.msra.mxu0 %v208
        %225 = vmatpush.xpose.msra.mxu0 %v205
        %226 = vmatmul.f32.gmra.mxu0 %v199
        %v227 = vpop.f32.mrf.mxu0
        %v228 = vadd.f32 0.0, %v227
        %229 = vmatmul.f32.gmra.mxu0 %v202
        %v230 = vpop.f32.mrf.mxu0
        %v231 = vadd.f32 0.0, %v230
        %232 = vdwg.mxu0
        %v233 = vmin.f32 %v228, 0.0
        %v234 = vmin.f32 %v231, 0.0
        %v235 = vmul.f32 %v233, 1.442695
        %v236 = vpow.pop %v235
        %v237 = vmul.f32 %v234, 1.442695
        %v238 = vpow.pop %v237
        %vm239 = vcmask 130048
        %240 = vst.msk [vmem:[%s176] sm:$0xff] %vm239, %v236
        %241 = vst.msk [vmem:[%s176 + $0x8] sm:$0xff] %vm239, %v238
        %s242 = sand.u32 %s92, 1
        %s243 = scalar_lea.sflag [#allocation3], %s242
        %s244 = sand.u32 %s92, 1
        %s245 = smul.addr %s244, 16
        %s246 = scalar_lea.vmem [#allocation2], %s245
        // Predicated region
        $region29: #{tpu_custom_call.1} parent=27 // pred_check
          %p247 = pneg %p102
        $region30: #{tpu_custom_call.1} parent=27 // pred_check_branch
          %249 = sbr.rel (%p247) target = $region32
        $region31: #{tpu_custom_call.1} parent=27 // pred_region
          %s250 = smul.u32 2, %s21
          %252 = vsyncadd %s243, 0
          %s253 = smul.addr %s20, 2
          %s254 = sadd.s32 %s250, %s253
          %s255 = smul.addr %s254, 8
          %s256 = scalar_lea.hbm %s2, %s255
          %s257 = sshll.u32 %s246, 4
          %s258 = int_to_ptr.vmem [resolvable:$true] %s257
          %s259 = sshll.u32 %s256, 4
          %s260 = int_to_ptr.hbm [resolvable:$true] %s259
          %265 = dma.vmem_to_hbm [thread:$0]  %s258, 256, %s260, %s243, 128, 128, 8
        $region32: #{tpu_custom_call.1} parent=27 // pred_fallthru
          _
      $region28: #{tpu_custom_call.1} parent=5 // pred_fallthru
        _
      %p266 = scmp.le.s32.totalorder 2, %s11
      // Predicated region
      $region33: #{tpu_custom_call.1} parent=5 // pred_check
        %p267 = pneg %p266
      $region34: #{tpu_custom_call.1} parent=5 // pred_check_branch
        %269 = sbr.rel (%p267) target = $region36
      $region35: #{tpu_custom_call.1} parent=5 // pred_region
        %s270 = ssub.s32 %s11, 2
        // Predicated region
        $region37: #{tpu_custom_call.1} parent=35 // pred_check
          %p271 = pneg %p108
        $region38: #{tpu_custom_call.1} parent=35 // pred_check_branch
          %273 = sbr.rel (%p271) target = $region40
        $region39: #{tpu_custom_call.1} parent=35 // pred_region
          %s274 = sand.u32 %s93, 1
          %s275 = scalar_lea.sflag [#allocation3], %s274
          %s276 = sand.u32 %s93, 1
          %s277 = smul.addr %s276, 16
          %s278 = scalar_lea.vmem [#allocation2], %s277
          %280 = dma.done %s275, 256
        $region40: #{tpu_custom_call.1} parent=35 // pred_fallthru
          _
      $region36: #{tpu_custom_call.1} parent=5 // pred_fallthru
        _
    $region6: #{tpu_custom_call.1} parent=1 // loop_footer
      %s15 = sadd.s32 1, %s11
    $region7: #{tpu_custom_call.1} parent=1 // loop_footer_branch
      %10 = sbr.rel target = $region3
    $region8: #{tpu_custom_call.1} parent=1 // loop_exit
      _
    %281 = vsyncpa [#allocation3], 1
    %s282 = scalar_lea.sflag [#allocation3], 1
    %283 = vsyncpa %s282, 1

</llo_original>
